<compile_context>
chip_gen: v7x
topology: tpu7x:2x2x1
jax: 0.10.0
libtpu: 0.0.40
codegen_flags: <defaults>
</compile_context>

<pallas_src>
import functools

import jax
import jax.numpy as jnp
from jax.experimental import pallas as pl
from jax.experimental.pallas import tpu as pltpu

_ALIGN = 8     # f32 sublane alignment for packed parameter rows
_LANE = 128    # lane width of the packed parameter buffer / batch tiles


def _round_up(n, m):
    return ((n + m - 1) // m) * m


def _param_layout(n_feature=1, n_hidden=(12, 12, 10), n_output=1):
    """8-aligned row offsets of each parameter block in the packed buffer.

    Order (torch layout, weights stored (out, in), biases as columns):
      w0, b0, w1, b1, w2, b2, wmu (row), bmu, sigma.
    """
    assert n_feature == 1 and n_output == 1, "kernel specialised for module defaults"
    H0, H1, H2 = n_hidden
    shapes = (
        (H0, n_feature),    # w0  (12, 1)
        (H0, 1),            # b0  (12, 1)
        (H1, H0),           # w1  (12, 12)
        (H1, 1),            # b1  (12, 1)
        (H2, H1),           # w2  (10, 12)
        (H2, 1),            # b2  (10, 1)
        (n_output, H2),     # wmu (1, 10)  row form
        (n_output, 1),      # bmu (1, 1)
        (1, 1),             # sigma (1, 1)
    )
    offs = []
    r = 0
    for rows, _cols in shapes:
        offs.append(r)
        r = _round_up(r + rows, _ALIGN)
    total_rows = _round_up(max(r, _ALIGN), _ALIGN)
    dims = (n_feature,) + tuple(n_hidden) + (n_output,)
    return tuple(offs), shapes, total_rows, dims


def init_params(key, n_feature=1, n_hidden=(12, 12, 10), n_output=1, std=0.1,
                dtype=jnp.float32):
    """Deterministic synthetic parameters (same shapes as the torch module)."""
    dims = [n_feature] + list(n_hidden) + [n_output]
    params = []
    for din, dout in zip(dims[:-1], dims[1:]):
        key, kw, kb = jax.random.split(key, 3)
        w = (jax.random.normal(kw, (dout, din), dtype) * 0.1).astype(dtype)   # torch (out, in)
        b = (jax.random.normal(kb, (dout,), dtype) * 0.1).astype(dtype)
        params.append((w, b))
    sigma = jnp.full((1, 1), std, dtype=dtype)
    return params, sigma


def pack_params(params, sigma, n_feature=1, n_hidden=(12, 12, 10), n_output=1):
    """Pack weights/biases/sigma into one lane-padded f32 buffer (single DMA)."""
    (w0, b0), (w1, b1), (w2, b2), (wmu, bmu) = params
    offs, shapes, total_rows, _dims = _param_layout(n_feature, n_hidden, n_output)
    arrs = [w0, b0.reshape(-1, 1),
            w1, b1.reshape(-1, 1),
            w2, b2.reshape(-1, 1),
            wmu, bmu.reshape(-1, 1),
            sigma.reshape(1, 1)]
    packed = jnp.zeros((total_rows, _LANE), jnp.float32)
    for a, off, (rows, cols) in zip(arrs, offs, shapes):
        assert a.shape == (rows, cols), (a.shape, (rows, cols))
        packed = packed.at[off:off + rows, 0:cols].set(a.astype(jnp.float32))
    return packed


def _mlp_kernel(x_ref, p_ref, out_ref, *, offs, dims):
    F, H0, H1, H2, O = dims
    o_w0, o_b0, o_w1, o_b1, o_w2, o_b2, o_wmu, o_bmu, o_sig = offs

    x = x_ref[...]                                     # (1, TILE_B) lane-dense

    # Static slices into the single packed parameter buffer (8-aligned rows).
    w0  = p_ref[o_w0:o_w0 + H0,  0:F]                  # (12, 1)
    b0  = p_ref[o_b0:o_b0 + H0,  0:1]                  # (12, 1)
    w1  = p_ref[o_w1:o_w1 + H1,  0:H0]                 # (12, 12)
    b1  = p_ref[o_b1:o_b1 + H1,  0:1]                  # (12, 1)
    w2  = p_ref[o_w2:o_w2 + H2,  0:H1]                 # (10, 12)
    b2  = p_ref[o_b2:o_b2 + H2,  0:1]                  # (10, 1)
    wmu = p_ref[o_wmu:o_wmu + O, 0:H2]                 # (1, 10)
    bmu = p_ref[o_bmu:o_bmu + O, 0:1]                  # (1, 1)
    sig = p_ref[o_sig:o_sig + 1, 0:1]                  # (1, 1)

    # Layer 0: K = n_feature = 1 -> VPU broadcast outer product, full lanes.
    h = jnp.tanh(w0 * x + b0)                                          # (12, TILE_B)
    # Hidden layers: lane-dense MXU matmuls (N = TILE_B), f32 accumulation.
    h = jnp.tanh(jnp.dot(w1, h, preferred_element_type=jnp.float32) + b1)   # (12, TILE_B)
    h = jnp.tanh(jnp.dot(w2, h, preferred_element_type=jnp.float32) + b2)   # (10, TILE_B)
    # Final O = 1 projection.
    mu = jnp.dot(wmu, h, preferred_element_type=jnp.float32) + bmu          # (1, TILE_B)

    # Row 0 = mu, row 1 = sigma broadcast: single lane-dense store.
    out_ref[...] = jnp.concatenate(
        [mu, jnp.broadcast_to(sig, mu.shape)], axis=0).astype(out_ref.dtype)


@functools.partial(jax.jit, static_argnames=("tile_b",))
def net_forward(x, packed_params, *, tile_b=16384):
    """Pallas forward pass: returns concat([mu, sigma.repeat(B, 1)], axis=1)."""
    B, F = x.shape
    offs, _shapes, total_rows, dims = _param_layout()
    assert F == dims[0] == 1
    H0, H1, H2, O = dims[1], dims[2], dims[3], dims[4]

    # Batch lives on the lane axis: (B, 1) -> (1, B), pad B to a lane-aligned tile.
    xt = x.reshape(1, B)
    if B <= tile_b:
        tile = max(_LANE, _round_up(B, _LANE))
    else:
        tile = _round_up(tile_b, _LANE)
    b_padded = _round_up(B, tile)
    if b_padded != B:
        xt = jnp.pad(xt, ((0, 0), (0, b_padded - B)))
    grid = (b_padded // tile,)

    kernel = functools.partial(_mlp_kernel, offs=offs, dims=dims)

    flops = 2 * b_padded * (F * H0 + H0 * H1 + H1 * H2 + H2 * O)
    transcendentals = b_padded * (H0 + H1 + H2)
    bytes_accessed = (b_padded * F + total_rows * _LANE + b_padded * 2) * 4

    out_t = pl.pallas_call(
        kernel,
        out_shape=jax.ShapeDtypeStruct((2, b_padded), jnp.float32),
        grid_spec=pltpu.PrefetchScalarGridSpec(
            num_scalar_prefetch=0,
            grid=grid,
            in_specs=[
                pl.BlockSpec((1, tile), lambda i: (0, i)),              # x tile (lane-dense)
                pl.BlockSpec((total_rows, _LANE), lambda i: (0, 0)),    # packed params (fetched once)
            ],
            out_specs=pl.BlockSpec((2, tile), lambda i: (0, i)),        # [mu; sigma] lane-dense
        ),
        compiler_params=pltpu.CompilerParams(
            dimension_semantics=("parallel",),
        ),
        cost_estimate=pl.CostEstimate(
            flops=flops,
            transcendentals=transcendentals,
            bytes_accessed=bytes_accessed,
        ),
    )(xt, packed_params)

    # Back to the module's (B, 2) layout; padded lanes sliced off.
    return out_t.T[:B]


def net_forward_ref(x, params, sigma):
    """Pure-JAX reference of the torch forward pass (weights in (out, in))."""
    (w0, b0), (w1, b1), (w2, b2), (wmu, bmu) = params
    h = jnp.tanh(x @ w0.T + b0)
    h = jnp.tanh(h @ w1.T + b1)
    h = jnp.tanh(h @ w2.T + b2)
    mu = h @ wmu.T + bmu
    sig = jnp.broadcast_to(sigma, (mu.shape[0], 1))
    return jnp.concatenate([mu, sig], axis=1)


if __name__ == "__main__":
    key = jax.random.PRNGKey(0)
    key, kx1, kx2 = jax.random.split(key, 3)

    n_feature, n_hidden, n_output = 1, (12, 12, 10), 1
    params, sigma = init_params(key, n_feature=n_feature, n_hidden=n_hidden,
                                n_output=n_output, std=0.1)
    packed = pack_params(params, sigma, n_feature, n_hidden, n_output)

    # Small batch (single lane-aligned tile).
    B = 8
    x = jax.random.normal(kx1, (B, n_feature), jnp.float32)
    out = jax.block_until_ready(net_forward(x, packed))
    ref = net_forward_ref(x, params, sigma)
    assert out.shape == (B, 2), out.shape
    assert jnp.allclose(out, ref, atol=1e-4, rtol=1e-4)

    # Ragged batch exercising the multi-tile grid + lane-padding path.
    B2 = 300
    x2 = jax.random.normal(kx2, (B2, n_feature), jnp.float32)
    out2 = jax.block_until_ready(net_forward(x2, packed, tile_b=128))
    ref2 = net_forward_ref(x2, params, sigma)
    assert out2.shape == (B2, 2), out2.shape
    assert jnp.allclose(out2, ref2, atol=1e-4, rtol=1e-4)

    print("KERNEL_OK")
</pallas_src>

<mosaic_0001>
module attributes {stable_mosaic.version = 11 : i64} {
  func.func @_mlp_kernel(%arg0: i32, %arg1: memref<1x128xf32, #tpu.memory_space<vmem>>, %arg2: memref<120x128xf32, #tpu.memory_space<vmem>>, %arg3: memref<2x128xf32, #tpu.memory_space<vmem>>) attributes {dimension_semantics = [#tpu.dimension_semantics<parallel>], iteration_bounds = array<i64: 1>, scalar_prefetch = 0 : i64, scratch_operands = 0 : i64, tpu.core_type = #tpu.core_type<tc>, window_params = [{transform_indices = @transform_0, window_bounds = array<i64: 1, 128>}, {pipeline_mode = #tpu.pipeline_mode<synchronous>, transform_indices = @transform_1, window_bounds = array<i64: 120, 128>}, {transform_indices = @transform_2, window_bounds = array<i64: 2, 128>}]} {
    %c0 = arith.constant 0 : index
    %c0_0 = arith.constant 0 : index
    %0 = vector.load %arg1[%c0, %c0_0] : memref<1x128xf32, #tpu.memory_space<vmem>>, vector<1x128xf32>
    %c0_1 = arith.constant 0 : index
    %c0_2 = arith.constant 0 : index
    %1 = vector.load %arg2[%c0_1, %c0_2] : memref<120x128xf32, #tpu.memory_space<vmem>>, vector<12x1xf32>
    %c16 = arith.constant 16 : index
    %c0_3 = arith.constant 0 : index
    %2 = vector.load %arg2[%c16, %c0_3] : memref<120x128xf32, #tpu.memory_space<vmem>>, vector<12x1xf32>
    %c32 = arith.constant 32 : index
    %c0_4 = arith.constant 0 : index
    %3 = vector.load %arg2[%c32, %c0_4] : memref<120x128xf32, #tpu.memory_space<vmem>>, vector<12x12xf32>
    %c48 = arith.constant 48 : index
    %c0_5 = arith.constant 0 : index
    %4 = vector.load %arg2[%c48, %c0_5] : memref<120x128xf32, #tpu.memory_space<vmem>>, vector<12x1xf32>
    %c64 = arith.constant 64 : index
    %c0_6 = arith.constant 0 : index
    %5 = vector.load %arg2[%c64, %c0_6] : memref<120x128xf32, #tpu.memory_space<vmem>>, vector<10x12xf32>
    %c80 = arith.constant 80 : index
    %c0_7 = arith.constant 0 : index
    %6 = vector.load %arg2[%c80, %c0_7] : memref<120x128xf32, #tpu.memory_space<vmem>>, vector<10x1xf32>
    %c96 = arith.constant 96 : index
    %c0_8 = arith.constant 0 : index
    %7 = vector.load %arg2[%c96, %c0_8] : memref<120x128xf32, #tpu.memory_space<vmem>>, vector<1x10xf32>
    %c104 = arith.constant 104 : index
    %c0_9 = arith.constant 0 : index
    %8 = vector.load %arg2[%c104, %c0_9] : memref<120x128xf32, #tpu.memory_space<vmem>>, vector<1x1xf32>
    %c112 = arith.constant 112 : index
    %c0_10 = arith.constant 0 : index
    %9 = vector.load %arg2[%c112, %c0_10] : memref<120x128xf32, #tpu.memory_space<vmem>>, vector<1x1xf32>
    %10 = vector.broadcast %1 : vector<12x1xf32> to vector<12x128xf32>
    %11 = vector.broadcast %0 : vector<1x128xf32> to vector<12x128xf32>
    %12 = arith.mulf %10, %11 : vector<12x128xf32>
    %13 = vector.broadcast %2 : vector<12x1xf32> to vector<12x128xf32>
    %14 = arith.addf %12, %13 : vector<12x128xf32>
    %15 = math.tanh %14 : vector<12x128xf32>
    %cst = arith.constant dense<0.000000e+00> : vector<12x128xf32>
    %16 = tpu.matmul %3, %15, %cst {dimension_numbers = #tpu.dot_dimension_numbers<[1], [0], [0], [1], [0, 0, 1, 1], [], []>} : vector<12x12xf32>, vector<12x128xf32>, vector<12x128xf32> -> vector<12x128xf32>
    %17 = vector.broadcast %4 : vector<12x1xf32> to vector<12x128xf32>
    %18 = arith.addf %16, %17 : vector<12x128xf32>
    %19 = math.tanh %18 : vector<12x128xf32>
    %cst_11 = arith.constant dense<0.000000e+00> : vector<10x128xf32>
    %20 = tpu.matmul %5, %19, %cst_11 {dimension_numbers = #tpu.dot_dimension_numbers<[1], [0], [0], [1], [0, 0, 1, 1], [], []>} : vector<10x12xf32>, vector<12x128xf32>, vector<10x128xf32> -> vector<10x128xf32>
    %21 = vector.broadcast %6 : vector<10x1xf32> to vector<10x128xf32>
    %22 = arith.addf %20, %21 : vector<10x128xf32>
    %23 = math.tanh %22 : vector<10x128xf32>
    %cst_12 = arith.constant dense<0.000000e+00> : vector<1x128xf32>
    %24 = tpu.matmul %7, %23, %cst_12 {dimension_numbers = #tpu.dot_dimension_numbers<[1], [0], [0], [1], [0, 0, 1, 1], [], []>} : vector<1x10xf32>, vector<10x128xf32>, vector<1x128xf32> -> vector<1x128xf32>
    %25 = vector.broadcast %8 : vector<1x1xf32> to vector<1x128xf32>
    %26 = arith.addf %24, %25 : vector<1x128xf32>
    %27 = vector.shape_cast %9 : vector<1x1xf32> to vector<1x1xf32>
    %28 = vector.broadcast %27 : vector<1x1xf32> to vector<1x128xf32>
    %29 = tpu.concatenate %26, %28 in 0 : vector<1x128xf32>, vector<1x128xf32> -> vector<2x128xf32>
    %c0_13 = arith.constant 0 : index
    %c0_14 = arith.constant 0 : index
    %30 = vector.load %arg3[%c0_13, %c0_14] : memref<2x128xf32, #tpu.memory_space<vmem>>, vector<2x128xf32>
    tpu.vector_store %arg3[%c0_13, %c0_14], %29 {strides = array<i32>} : memref<2x128xf32, #tpu.memory_space<vmem>>, vector<2x128xf32>,
    return
  }
  func.func @transform_0(%arg0: i32) -> (i32, i32) {
    %c0_i32 = arith.constant 0 : i32
    %c0_i32_0 = arith.constant 0 : i32
    return %c0_i32, %arg0 : i32, i32
  }
  func.func @transform_1(%arg0: i32) -> (i32, i32) {
    %c0_i32 = arith.constant 0 : i32
    %c0_i32_0 = arith.constant 0 : i32
    %c0_i32_1 = arith.constant 0 : i32
    return %c0_i32, %c0_i32_0 : i32, i32
  }
  func.func @transform_2(%arg0: i32) -> (i32, i32) {
    %c0_i32 = arith.constant 0 : i32
    %c0_i32_0 = arith.constant 0 : i32
    return %c0_i32, %arg0 : i32, i32
  }
}

</mosaic_0001>

<llo_original>
// kernel: net_forward.1
$region0: #{net_forward.1}
  #allocation0 [shape = 'u32[]', space=smem, size = 0x4, offset = 0x4, fixed_abs, tag = 'smem constant byte address 0x4 - core index']
  #allocation1 [shape = 'u32[144,128]{1,0:T(1,128)}', space=vmem, size = 0x12000, scoped, tag = 'internal scratch']
  %s0 = inlined_call_operand.vmem [shape: f32[1,128], index: 0, kind: input, shape index: {}]
  %s1 = inlined_call_operand.hbm [shape: f32[120,128], index: 1, kind: input, shape index: {}]
  %s2 = inlined_call_operand.hbm [shape: f32[2,128], index: 2, kind: output, shape index: {}]
  %s3 = sld [smem:[#allocation0]]
  $region22: #{net_forward.1} parent=0
    _
  %s5 = ssub.s32 1, %s3
  %s6 = scalar_select 0, %s5, %s3
  $region1: #{net_forward.1} parent=0
    #allocation2 [shape = 'u8[61440]{0}', space=vmem, size = 0xf000, scoped, tag = 'input window, operand 1, single buffered']
    #allocation3 [shape = 's32[1]{0}', space=sflag, size = 0x4, scoped, tag = 'scoped memory for net_forward.1']
    #allocation4 [shape = 's32[1]{0}', space=sflag, size = 0x4, scoped, tag = 'scoped memory for net_forward.1']
    #allocation5 [shape = 'u8[1024]{0}', space=vmem, size = 0x400, scoped, tag = 'output window, operand 0, single buffered']
    %7 = vsyncpa [#allocation3], 0
    %8 = vsyncpa [#allocation4], 0
    // Predicated region
    $region2: #{net_forward.1} parent=1 // pred_check
      _
    $region3: #{net_forward.1} parent=1 // pred_check_branch
      %10 = sbr.rel (0) target = $region5
    $region4: #{net_forward.1} parent=1 // pred_region
      _
    $region5: #{net_forward.1} parent=1 // pred_fallthru
      _
    // Predicated region
    $region6: #{net_forward.1} parent=1 // pred_check
      _
    $region7: #{net_forward.1} parent=1 // pred_check_branch
      %12 = sbr.rel (0) target = $region9
    $region8: #{net_forward.1} parent=1 // pred_region
      %s14 = ssub.s32 1920, 1920
      %15 = vsyncadd [#allocation3], %s14
      %s16 = sshll.u32 [#allocation2], 4
      %s17 = int_to_ptr.vmem [resolvable:$true] %s16
      %22 = dma.hbm_to_vmem [thread:$0]  %s1, 1920, %s17, [#allocation3], 128, 128, 8
    $region9: #{net_forward.1} parent=1 // pred_fallthru
      _
    // Predicated region
    $region10: #{net_forward.1} parent=1 // pred_check
      _
    $region11: #{net_forward.1} parent=1 // pred_check_branch
      %24 = sbr.rel (0) target = $region13
    $region12: #{net_forward.1} parent=1 // pred_region
      %25 = dma.done [#allocation3], 1920
    $region13: #{net_forward.1} parent=1 // pred_fallthru
      _
    %v26 = vld [vmem:[%s0] sm:$0x1]
    %v27 = vld [vmem:[#allocation2] sm:$0xff]
    %v28 = vld [vmem:[#allocation2 + $0x8] sm:$0xf]
    %v29 = vld [vmem:[#allocation2 + $0x10] sm:$0xff]
    %v30 = vld [vmem:[#allocation2 + $0x18] sm:$0xf]
    %v31 = vld [vmem:[#allocation2 + $0x20] sm:$0xff]
    %v32 = vld [vmem:[#allocation2 + $0x28] sm:$0xf]
    %v33 = vld [vmem:[#allocation2 + $0x30] sm:$0xff]
    %v34 = vld [vmem:[#allocation2 + $0x38] sm:$0xf]
    %v35 = vld [vmem:[#allocation2 + $0x40] sm:$0xff]
    %v36 = vld [vmem:[#allocation2 + $0x48] sm:$0x3]
    %v37 = vld [vmem:[#allocation2 + $0x50] sm:$0xff]
    %v38 = vld [vmem:[#allocation2 + $0x58] sm:$0x3]
    %v39 = vld [vmem:[#allocation2 + $0x60] sm:$0x1]
    %v40 = vld [vmem:[#allocation2 + $0x68] sm:$0x1]
    %v41 = vld [vmem:[#allocation2 + $0x70] sm:$0x1]
    %43 = vset.pattern.permute.xlu0 0
    %44 = vperm.xlu0 %43, %v27
    %v45 = vpop.permute.xlu0 %44
    %48 = vset.pattern.permute.xlu0 0
    %49 = vperm.xlu0 %48, %v28
    %v50 = vpop.permute.xlu0 %49
    %v53 = vlaneseq
    %v54 = vshrl.u32 %v53, 7
    %v55 = vsub.s32 0, %v54
    %v56 = vrot.slane %v26, %v55
    %v58 = vmul.f32 %v45, %v56
    %v59 = vmul.f32 %v50, %v56
    %61 = vset.pattern.permute.xlu0 0
    %62 = vperm.xlu0 %61, %v29
    %v63 = vpop.permute.xlu0 %62
    %66 = vset.pattern.permute.xlu0 0
    %67 = vperm.xlu0 %66, %v30
    %v68 = vpop.permute.xlu0 %67
    %v70 = vadd.f32 %v58, %v63
    %v71 = vadd.f32 %v59, %v68
    %v72 = vtanh.pop %v70
    %v73 = vtanh.pop %v71
    %75 = vset.pattern.permute.xlu0 0
    %76 = vperm.xlu0 %75, %v33
    %v77 = vpop.permute.xlu0 %76
    %80 = vset.pattern.permute.xlu0 0
    %81 = vperm.xlu0 %80, %v34
    %v82 = vpop.permute.xlu0 %81
    %vm84 = vcmask 97280
    %v86 = vsel %vm84, %v31, 0
    %v89 = vsel %vm84, %v32, 0
    %vm91 = vcmask 1043456
    %v93 = vsel %vm91, %v73, 0
    %95 = vmatprep.subr.mxu0 0.0
    %96 = vmatpush1.msra.mxu0 %v72
    %97 = vmatprep.subr.mxu0 0.0
    %98 = vmatpush1.msra.mxu0 %v93
    %99 = vmatprep.subr.mxu0 0.0
    %100 = vmatpush1.msra.mxu0 0.0
    %101 = vmatprep.subr.mxu0 0.0
    %102 = vmatpush1.msra.mxu0 0.0
    %103 = vmatprep.subr.mxu0 0.0
    %104 = vmatpush1.msra.mxu0 0.0
    %105 = vmatprep.subr.mxu0 0.0
    %106 = vmatpush1.msra.mxu0 0.0
    %107 = vmatprep.subr.mxu0 0.0
    %108 = vmatpush1.msra.mxu0 0.0
    %109 = vmatprep.subr.mxu0 0.0
    %110 = vmatpush1.msra.mxu0 0.0
    %111 = vmatprep.subr.mxu0 0.0
    %112 = vmatpush1.msra.mxu0 0.0
    %113 = vmatprep.subr.mxu0 0.0
    %114 = vmatpush1.msra.mxu0 0.0
    %115 = vmatprep.subr.mxu0 0.0
    %116 = vmatpush1.msra.mxu0 0.0
    %117 = vmatprep.subr.mxu0 0.0
    %118 = vmatpush1.msra.mxu0 0.0
    %119 = vmatprep.subr.mxu0 0.0
    %120 = vmatpush1.msra.mxu0 0.0
    %121 = vmatprep.subr.mxu0 0.0
    %122 = vmatpush1.msra.mxu0 0.0
    %123 = vmatprep.subr.mxu0 0.0
    %124 = vmatpush1.msra.mxu0 0.0
    %125 = vmatprep.subr.mxu0 0.0
    %126 = vmatpush1.msra.mxu0 0.0
    %127 = vmatprep.subr.mxu0 0.0
    %128 = vmatpush1.msra.mxu0 0.0
    %129 = vmatprep.subr.mxu0 0.0
    %130 = vmatpush1.msra.mxu0 0.0
    %131 = vmatprep.subr.mxu0 0.0
    %132 = vmatpush1.msra.mxu0 0.0
    %133 = vmatprep.subr.mxu0 0.0
    %134 = vmatpush1.msra.mxu0 0.0
    %135 = vmatprep.subr.mxu0 0.0
    %136 = vmatpush1.msra.mxu0 0.0
    %137 = vmatprep.subr.mxu0 0.0
    %138 = vmatpush1.msra.mxu0 0.0
    %139 = vmatprep.subr.mxu0 0.0
    %140 = vmatpush1.msra.mxu0 0.0
    %141 = vmatprep.subr.mxu0 0.0
    %142 = vmatpush1.msra.mxu0 0.0
    %143 = vmatprep.subr.mxu0 0.0
    %144 = vmatpush1.msra.mxu0 0.0
    %145 = vmatprep.subr.mxu0 0.0
    %146 = vmatpush1.msra.mxu0 0.0
    %147 = vmatprep.subr.mxu0 0.0
    %148 = vmatpush1.msra.mxu0 0.0
    %149 = vmatprep.subr.mxu0 0.0
    %150 = vmatpush1.msra.mxu0 0.0
    %151 = vmatprep.subr.mxu0 0.0
    %152 = vmatpush1.msra.mxu0 0.0
    %153 = vmatprep.subr.mxu0 0.0
    %154 = vmatpush1.msra.mxu0 0.0
    %155 = vmatprep.subr.mxu0 0.0
    %156 = vmatpush1.msra.mxu0 0.0
    %157 = vmatprep.subr.mxu0 0.0
    %158 = vmatpush1.msra.mxu0 0.0
    %159 = vmatprep.mubr.f32.mxu0 0.0
    %160 = vmatmul.mubr.f32.gmra.mrb[0].mxu0 %v86
    %v161 = vpop.f32.mrb[0].mxu0
    %v162 = vadd.f32 %v77, %v161
    %v163 = vpop.f32.mrb[0].mxu0
    %164 = vmatprep.mubr.f32.mxu0 0.0
    %165 = vmatmul.mubr.f32.gmra.mrb[0].mxu0 %v89
    %v166 = vpop.f32.mrb[0].mxu0
    %v167 = vadd.f32 %v82, %v166
    %v168 = vpop.f32.mrb[0].mxu0
    %169 = vdwg.mxu0
    %v170 = vtanh.pop %v162
    %v171 = vtanh.pop %v167
    %173 = vset.pattern.permute.xlu0 0
    %174 = vperm.xlu0 %173, %v37
    %v175 = vpop.permute.xlu0 %174
    %178 = vset.pattern.permute.xlu0 0
    %179 = vperm.xlu0 %178, %v38
    %v180 = vpop.permute.xlu0 %179
    %v183 = vsel %vm84, %v35, 0
    %v186 = vsel %vm84, %v36, 0
    %v189 = vsel %vm91, %v171, 0
    %191 = vmatprep.subr.mxu0 0.0
    %192 = vmatpush1.msra.mxu0 %v170
    %193 = vmatprep.subr.mxu0 0.0
    %194 = vmatpush1.msra.mxu0 %v189
    %195 = vmatprep.subr.mxu0 0.0
    %196 = vmatpush1.msra.mxu0 0.0
    %197 = vmatprep.subr.mxu0 0.0
    %198 = vmatpush1.msra.mxu0 0.0
    %199 = vmatprep.subr.mxu0 0.0
    %200 = vmatpush1.msra.mxu0 0.0
    %201 = vmatprep.subr.mxu0 0.0
    %202 = vmatpush1.msra.mxu0 0.0
    %203 = vmatprep.subr.mxu0 0.0
    %204 = vmatpush1.msra.mxu0 0.0
    %205 = vmatprep.subr.mxu0 0.0
    %206 = vmatpush1.msra.mxu0 0.0
    %207 = vmatprep.subr.mxu0 0.0
    %208 = vmatpush1.msra.mxu0 0.0
    %209 = vmatprep.subr.mxu0 0.0
    %210 = vmatpush1.msra.mxu0 0.0
    %211 = vmatprep.subr.mxu0 0.0
    %212 = vmatpush1.msra.mxu0 0.0
    %213 = vmatprep.subr.mxu0 0.0
    %214 = vmatpush1.msra.mxu0 0.0
    %215 = vmatprep.subr.mxu0 0.0
    %216 = vmatpush1.msra.mxu0 0.0
    %217 = vmatprep.subr.mxu0 0.0
    %218 = vmatpush1.msra.mxu0 0.0
    %219 = vmatprep.subr.mxu0 0.0
    %220 = vmatpush1.msra.mxu0 0.0
    %221 = vmatprep.subr.mxu0 0.0
    %222 = vmatpush1.msra.mxu0 0.0
    %223 = vmatprep.subr.mxu0 0.0
    %224 = vmatpush1.msra.mxu0 0.0
    %225 = vmatprep.subr.mxu0 0.0
    %226 = vmatpush1.msra.mxu0 0.0
    %227 = vmatprep.subr.mxu0 0.0
    %228 = vmatpush1.msra.mxu0 0.0
    %229 = vmatprep.subr.mxu0 0.0
    %230 = vmatpush1.msra.mxu0 0.0
    %231 = vmatprep.subr.mxu0 0.0
    %232 = vmatpush1.msra.mxu0 0.0
    %233 = vmatprep.subr.mxu0 0.0
    %234 = vmatpush1.msra.mxu0 0.0
    %235 = vmatprep.subr.mxu0 0.0
    %236 = vmatpush1.msra.mxu0 0.0
    %237 = vmatprep.subr.mxu0 0.0
    %238 = vmatpush1.msra.mxu0 0.0
    %239 = vmatprep.subr.mxu0 0.0
    %240 = vmatpush1.msra.mxu0 0.0
    %241 = vmatprep.subr.mxu0 0.0
    %242 = vmatpush1.msra.mxu0 0.0
    %243 = vmatprep.subr.mxu0 0.0
    %244 = vmatpush1.msra.mxu0 0.0
    %245 = vmatprep.subr.mxu0 0.0
    %246 = vmatpush1.msra.mxu0 0.0
    %247 = vmatprep.subr.mxu0 0.0
    %248 = vmatpush1.msra.mxu0 0.0
    %249 = vmatprep.subr.mxu0 0.0
    %250 = vmatpush1.msra.mxu0 0.0
    %251 = vmatprep.subr.mxu0 0.0
    %252 = vmatpush1.msra.mxu0 0.0
    %253 = vmatprep.subr.mxu0 0.0
    %254 = vmatpush1.msra.mxu0 0.0
    %255 = vmatprep.mubr.f32.mxu0 0.0
    %256 = vmatmul.mubr.f32.gmra.mrb[0].mxu0 %v183
    %v257 = vpop.f32.mrb[0].mxu0
    %v258 = vadd.f32 %v175, %v257
    %v259 = vpop.f32.mrb[0].mxu0
    %260 = vmatprep.mubr.f32.mxu0 0.0
    %261 = vmatmul.mubr.f32.gmra.mrb[0].mxu0 %v186
    %v262 = vpop.f32.mrb[0].mxu0
    %v263 = vadd.f32 %v180, %v262
    %v264 = vpop.f32.mrb[0].mxu0
    %265 = vdwg.mxu0
    %v266 = vtanh.pop %v258
    %v267 = vtanh.pop %v263
    %269 = vset.pattern.permute.xlu0 0
    %270 = vperm.xlu0 %269, %v40
    %v271 = vpop.permute.xlu0 %270
    %vm273 = vcmask 80896
    %v275 = vsel %vm273, %v39, 0
    %vm277 = vcmask 1041408
    %v279 = vsel %vm277, %v267, 0
    %281 = vmatprep.subr.mxu0 0.0
    %282 = vmatpush1.msra.mxu0 %v266
    %283 = vmatprep.subr.mxu0 0.0
    %284 = vmatpush1.msra.mxu0 %v279
    %285 = vmatprep.subr.mxu0 0.0
    %286 = vmatpush1.msra.mxu0 0.0
    %287 = vmatprep.subr.mxu0 0.0
    %288 = vmatpush1.msra.mxu0 0.0
    %289 = vmatprep.subr.mxu0 0.0
    %290 = vmatpush1.msra.mxu0 0.0
    %291 = vmatprep.subr.mxu0 0.0
    %292 = vmatpush1.msra.mxu0 0.0
    %293 = vmatprep.subr.mxu0 0.0
    %294 = vmatpush1.msra.mxu0 0.0
    %295 = vmatprep.subr.mxu0 0.0
    %296 = vmatpush1.msra.mxu0 0.0
    %297 = vmatprep.subr.mxu0 0.0
    %298 = vmatpush1.msra.mxu0 0.0
    %299 = vmatprep.subr.mxu0 0.0
    %300 = vmatpush1.msra.mxu0 0.0
    %301 = vmatprep.subr.mxu0 0.0
    %302 = vmatpush1.msra.mxu0 0.0
    %303 = vmatprep.subr.mxu0 0.0
    %304 = vmatpush1.msra.mxu0 0.0
    %305 = vmatprep.subr.mxu0 0.0
    %306 = vmatpush1.msra.mxu0 0.0
    %307 = vmatprep.subr.mxu0 0.0
    %308 = vmatpush1.msra.mxu0 0.0
    %309 = vmatprep.subr.mxu0 0.0
    %310 = vmatpush1.msra.mxu0 0.0
    %311 = vmatprep.subr.mxu0 0.0
    %312 = vmatpush1.msra.mxu0 0.0
    %313 = vmatprep.subr.mxu0 0.0
    %314 = vmatpush1.msra.mxu0 0.0
    %315 = vmatprep.subr.mxu0 0.0
    %316 = vmatpush1.msra.mxu0 0.0
    %317 = vmatprep.subr.mxu0 0.0
    %318 = vmatpush1.msra.mxu0 0.0
    %319 = vmatprep.subr.mxu0 0.0
    %320 = vmatpush1.msra.mxu0 0.0
    %321 = vmatprep.subr.mxu0 0.0
    %322 = vmatpush1.msra.mxu0 0.0
    %323 = vmatprep.subr.mxu0 0.0
    %324 = vmatpush1.msra.mxu0 0.0
    %325 = vmatprep.subr.mxu0 0.0
    %326 = vmatpush1.msra.mxu0 0.0
    %327 = vmatprep.subr.mxu0 0.0
    %328 = vmatpush1.msra.mxu0 0.0
    %329 = vmatprep.subr.mxu0 0.0
    %330 = vmatpush1.msra.mxu0 0.0
    %331 = vmatprep.subr.mxu0 0.0
    %332 = vmatpush1.msra.mxu0 0.0
    %333 = vmatprep.subr.mxu0 0.0
    %334 = vmatpush1.msra.mxu0 0.0
    %335 = vmatprep.subr.mxu0 0.0
    %336 = vmatpush1.msra.mxu0 0.0
    %337 = vmatprep.subr.mxu0 0.0
    %338 = vmatpush1.msra.mxu0 0.0
    %339 = vmatprep.subr.mxu0 0.0
    %340 = vmatpush1.msra.mxu0 0.0
    %341 = vmatprep.subr.mxu0 0.0
    %342 = vmatpush1.msra.mxu0 0.0
    %343 = vmatprep.subr.mxu0 0.0
    %344 = vmatpush1.msra.mxu0 0.0
    %345 = vmatprep.mubr.f32.mxu0 0.0
    %346 = vmatmul.mubr.f32.gmra.mrb[0].mxu0 %v275
    %v347 = vpop.f32.mrb[0].mxu0
    %v348 = vadd.f32 %v271, %v347
    %v349 = vpop.f32.mrb[0].mxu0
    %350 = vdwg.mxu0
    %352 = vset.pattern.permute.xlu0 0
    %353 = vperm.xlu0 %352, %v41
    %v354 = vpop.permute.xlu0 %353
    %v355 = vrot.slane %v354, 7
    %vm357 = vcmask 1040384
    %v358 = vsel %vm357, %v348, %v355
    %359 = vst [vmem:[#allocation5] sm:$0x3] %v358
    // Predicated region
    $region14: #{net_forward.1} parent=1 // pred_check
      _
    $region15: #{net_forward.1} parent=1 // pred_check_branch
      %361 = sbr.rel (0) target = $region17
    $region16: #{net_forward.1} parent=1 // pred_region
      %s363 = ssub.s32 32, 32
      %364 = vsyncadd [#allocation4], %s363
      %s366 = sshll.u32 [#allocation5], 4
      %s367 = int_to_ptr.vmem [resolvable:$true] %s366
      %369 = dma.vmem_to_hbm [thread:$0]  %s367, 32, %s2, [#allocation4]
    $region17: #{net_forward.1} parent=1 // pred_fallthru
      _
    // Predicated region
    $region18: #{net_forward.1} parent=1 // pred_check
      _
    $region19: #{net_forward.1} parent=1 // pred_check_branch
      %371 = sbr.rel (0) target = $region21
    $region20: #{net_forward.1} parent=1 // pred_region
      %372 = dma.done [#allocation4], 32
    $region21: #{net_forward.1} parent=1 // pred_fallthru
      _
    %373 = vsyncpa [#allocation3], 1
    %374 = vsyncpa [#allocation4], 1

</llo_original>
